<compile_context>
chip_gen: v6e
topology: v6e:2x2x1
jax: 0.10.0
libtpu: 0.0.40
codegen_flags: <defaults>
</compile_context>

<pallas_src>
import functools

import jax
import jax.numpy as jnp
from jax.experimental import pallas as pl
from jax.experimental.pallas import tpu as pltpu


def _pow_factor(one_minus_p, alpha):
    """(1 - p) ** alpha, specialized at trace time so alpha=1 / small-int alpha
    never touch the pow (exp+log) path that shares the EUP with the softmax exp."""
    if alpha == 1.0:
        return one_minus_p
    if float(alpha).is_integer() and 0.0 <= alpha <= 8.0:
        k = int(alpha)
        if k == 0:
            return jnp.ones_like(one_minus_p)
        r = one_minus_p
        for _ in range(k - 1):
            r = r * one_minus_p
        return r
    return one_minus_p ** alpha


def _dice_loss_kernel(logits_ref, targets_ref, out_ref, *, alpha, gamma, n_true):
    step = pl.program_id(0)

    # Output block index is (0, 0) for every step -> it stays VMEM-resident and
    # doubles as the accumulator; zero it once.
    @pl.when(step == 0)
    def _():
        out_ref[...] = jnp.zeros_like(out_ref)

    x = logits_ref[...].astype(jnp.float32)            # (TN, C) f32 in VMEM
    tgt = targets_ref[...]                             # (TN, 1) int32
    tn, c = x.shape

    # Numerically-stable softmax pieces; never materialize full probs or a
    # float one-hot.
    m = jnp.max(x, axis=1, keepdims=True)              # (TN, 1)   XLU
    e = jnp.exp(x - m)                                 # (TN, C)   EUP
    col_ids = jax.lax.broadcasted_iota(jnp.int32, (1, c), 1)   # broadcasts vs tgt
    sel = jnp.where(col_ids == tgt, e, 0.0)            # (TN, C)

    if c <= 2048:
        # Offload the two lane-axis row sums to the otherwise-idle MXU.
        ones_rhs = jnp.ones((c, 128), jnp.float32)
        denom = jnp.dot(e, ones_rhs, preferred_element_type=jnp.float32)[:, :1]
        num = jnp.dot(sel, ones_rhs, preferred_element_type=jnp.float32)[:, :1]
    else:
        # Very wide C: the ones RHS would dominate VMEM; use XLU reductions.
        denom = jnp.sum(e, axis=1, keepdims=True)
        num = jnp.sum(sel, axis=1, keepdims=True)

    p = num / denom                                    # probs[n, targets[n]]
    pf = _pow_factor(1.0 - p, alpha) * p
    loss = 1.0 - (2.0 * pf + gamma) / (pf + 1.0 + gamma)   # (TN, 1)

    # Ragged last block: rows >= N carry unspecified data; mask AFTER the full
    # per-row arithmetic (the select discards any Inf/NaN from garbage rows).
    row_ids = step * tn + jax.lax.broadcasted_iota(jnp.int32, (tn, 1), 0)
    loss = jnp.where(row_ids < n_true, loss, 0.0)

    out_ref[...] += jnp.sum(loss)                      # running partial sum


def self_adj_dice_loss(logits, targets, alpha=1.0, gamma=1.0, reduction="mean"):
    """Self-adjusting Dice loss (Pallas TPU). logits: (N, C), targets: (N,)."""
    if reduction not in ("mean", "sum"):
        # TODO(synk): 'none' reduction needs a per-row lane-dense output spec.
        raise NotImplementedError(f"Reduction `{reduction}` not implemented in kernel.")

    n, c = logits.shape
    targets_2d = targets.reshape(n, 1).astype(jnp.int32)
    # TODO(synk): for C < 128 a lane-dense k-rows-per-vreg packing (segmented
    # softmax reductions) would recover up to 128/C lane utilization.

    # Per-generation VMEM budget: v5e/v6e have 128 MiB per core, v7x only 64 MiB.
    try:
        vmem_cap = int(pltpu.get_tpu_info().vmem_capacity_bytes)
    except Exception:
        vmem_cap = 64 * 1024 * 1024
    if vmem_cap >= 100 * 1024 * 1024:       # v5e / v6e
        budget, vmem_limit = 40 * 1024 * 1024, 64 * 1024 * 1024
    else:                                   # v7x or unknown -> conservative
        budget, vmem_limit = 24 * 1024 * 1024, 48 * 1024 * 1024

    # Per-row VMEM: double-buffered logits stream + lane-padded (x,128) targets
    # blocks (512 B/row), plus in-kernel f32 wide temporaries (upcast/exp/select)
    # and the narrow lane-padded (x,1) per-row chain.
    in_item = jnp.dtype(logits.dtype).itemsize
    per_row = 2 * (c * in_item + 512) + 4 * c * 4 + 8 * 512
    tile_rows = budget // per_row
    tile_rows = max(32, min(8192, (tile_rows // 32) * 32))      # 32: safe for f32/bf16/i8 sublane tiling
    tile_rows = min(tile_rows, max(32, ((n + 31) // 32) * 32))

    steps = pl.cdiv(n, tile_rows)

    kernel = functools.partial(_dice_loss_kernel, alpha=float(alpha),
                               gamma=float(gamma), n_true=n)

    cost = pl.CostEstimate(
        flops=10 * n * c,
        transcendentals=n * c,
        bytes_accessed=in_item * n * c + 4 * n + 4 * 8 * 128,
    )

    out = pl.pallas_call(
        kernel,
        out_shape=jax.ShapeDtypeStruct((8, 128), jnp.float32),
        grid_spec=pltpu.PrefetchScalarGridSpec(
            num_scalar_prefetch=0,
            grid=(steps,),
            in_specs=[
                pl.BlockSpec((tile_rows, c), lambda i: (i, 0)),
                pl.BlockSpec((tile_rows, 1), lambda i: (i, 0)),
            ],
            out_specs=pl.BlockSpec((8, 128), lambda i: (0, 0)),
        ),
        compiler_params=pltpu.CompilerParams(
            # Single accumulator-carrying axis. TODO(synk): on v7x, add a
            # leading CORE_PARALLEL axis (one partial-sum block per TensorCore)
            # to use both cores; plain 'parallel' does not reliably split TCs.
            dimension_semantics=("arbitrary",),
            vmem_limit_bytes=vmem_limit,
        ),
        cost_estimate=cost,
    )(logits, targets_2d)

    total = out[0, 0]
    if reduction == "sum":
        return total
    return total * (1.0 / n)               # 'mean'


def _reference(logits, targets, alpha=1.0, gamma=1.0, reduction="mean"):
    probs = jax.nn.softmax(logits.astype(jnp.float32), axis=1)
    p = jnp.take_along_axis(probs, targets[:, None], axis=1)
    pf = (1.0 - p) ** alpha * p
    loss = 1.0 - (2.0 * pf + gamma) / (pf + 1.0 + gamma)
    return loss.mean() if reduction == "mean" else loss.sum()


if __name__ == "__main__":
    key = jax.random.PRNGKey(0)
    k1, k2 = jax.random.split(key)

    # N not a multiple of the tile -> exercises the ragged last block + row mask.
    N, C = 10, 32
    logits = jax.random.normal(k1, (N, C), dtype=jnp.float32)
    targets = jax.random.randint(k2, (N,), 0, C, dtype=jnp.int32)

    loss = self_adj_dice_loss(logits, targets, alpha=1.0, gamma=1.0, reduction="mean")
    loss = jax.block_until_ready(loss)
    ref = _reference(logits, targets, alpha=1.0, gamma=1.0, reduction="mean")
    assert jnp.allclose(loss, ref, atol=1e-5, rtol=1e-5), (loss, ref)

    # bf16 logits (kernel upcasts in VMEM), integer alpha path, 'sum' reduction.
    logits_bf16 = logits.astype(jnp.bfloat16)
    loss_bf = self_adj_dice_loss(logits_bf16, targets, alpha=2.0, gamma=0.5,
                                 reduction="sum")
    loss_bf = jax.block_until_ready(loss_bf)
    ref_bf = _reference(logits_bf16, targets, alpha=2.0, gamma=0.5, reduction="sum")
    assert jnp.allclose(loss_bf, ref_bf, atol=1e-4, rtol=1e-4), (loss_bf, ref_bf)

    print("KERNEL_OK")
</pallas_src>

<mosaic_0001>
module attributes {stable_mosaic.version = 11 : i64} {
  func.func @_dice_loss_kernel(%arg0: i32, %arg1: memref<32x32xf32, #tpu.memory_space<vmem>>, %arg2: memref<32x1xi32, #tpu.memory_space<vmem>>, %arg3: memref<8x128xf32, #tpu.memory_space<vmem>>) attributes {dimension_semantics = [#tpu.dimension_semantics<arbitrary>], iteration_bounds = array<i64: 1>, scalar_prefetch = 0 : i64, scratch_operands = 0 : i64, tpu.core_type = #tpu.core_type<tc>, window_params = [{transform_indices = @transform_0, window_bounds = array<i64: 32, 32>}, {transform_indices = @transform_1, window_bounds = array<i64: 32, 1>}, {pipeline_mode = #tpu.pipeline_mode<synchronous>, transform_indices = @transform_2, window_bounds = array<i64: 8, 128>}]} {
    %c0_i32 = arith.constant 0 : i32
    %0 = arith.cmpi eq, %arg0, %c0_i32 : i32
    %1 = arith.extui %0 : i1 to i32
    %c0_i32_0 = arith.constant 0 : i32
    %2 = arith.cmpi ne, %1, %c0_i32_0 : i32
    scf.if %2 {
      %cst_20 = arith.constant 0.000000e+00 : f32
      %52 = vector.broadcast %cst_20 : f32 to vector<8x128xf32>
      %c0_21 = arith.constant 0 : index
      %c0_22 = arith.constant 0 : index
      %53 = vector.load %arg3[%c0_21, %c0_22] : memref<8x128xf32, #tpu.memory_space<vmem>>, vector<8x128xf32>
      tpu.vector_store %arg3[%c0_21, %c0_22], %52 {strides = array<i32>} : memref<8x128xf32, #tpu.memory_space<vmem>>, vector<8x128xf32>,
    } else {
    }
    %c0 = arith.constant 0 : index
    %c0_1 = arith.constant 0 : index
    %3 = vector.load %arg1[%c0, %c0_1] : memref<32x32xf32, #tpu.memory_space<vmem>>, vector<32x32xf32>
    %c0_2 = arith.constant 0 : index
    %c0_3 = arith.constant 0 : index
    %4 = vector.load %arg2[%c0_2, %c0_3] : memref<32x1xi32, #tpu.memory_space<vmem>>, vector<32x1xi32>
    %cst = arith.constant dense<0xFF800000> : vector<32xf32>
    %5 = vector.multi_reduction <maximumf>, %3, %cst [1] : vector<32x32xf32> to vector<32xf32>
    %6 = vector.shape_cast %5 : vector<32xf32> to vector<32x1xf32>
    %7 = vector.broadcast %6 : vector<32x1xf32> to vector<32x32xf32>
    %8 = arith.subf %3, %7 : vector<32x32xf32>
    %9 = math.exp %8 : vector<32x32xf32>
    %10 = tpu.iota {dimensions = array<i32: 1>} : vector<1x32xi32>
    %11 = vector.broadcast %10 : vector<1x32xi32> to vector<32x32xi32>
    %12 = vector.broadcast %4 : vector<32x1xi32> to vector<32x32xi32>
    %13 = arith.cmpi eq, %11, %12 : vector<32x32xi32>
    %cst_4 = arith.constant 0.000000e+00 : f32
    %14 = vector.broadcast %cst_4 : f32 to vector<32x32xf32>
    %15 = arith.select %13, %9, %14 : vector<32x32xi1>, vector<32x32xf32>
    %cst_5 = arith.constant 1.000000e+00 : f32
    %16 = vector.broadcast %cst_5 : f32 to vector<32x128xf32>
    %cst_6 = arith.constant dense<0.000000e+00> : vector<32x128xf32>
    %17 = tpu.matmul %9, %16, %cst_6 {dimension_numbers = #tpu.dot_dimension_numbers<[1], [0], [0], [1], [0, 0, 1, 1], [], []>} : vector<32x32xf32>, vector<32x128xf32>, vector<32x128xf32> -> vector<32x128xf32>
    %18 = vector.extract_strided_slice %17 {offsets = [0, 0], sizes = [32, 1], strides = [1, 1]} : vector<32x128xf32> to vector<32x1xf32>
    %cst_7 = arith.constant dense<0.000000e+00> : vector<32x128xf32>
    %19 = tpu.matmul %15, %16, %cst_7 {dimension_numbers = #tpu.dot_dimension_numbers<[1], [0], [0], [1], [0, 0, 1, 1], [], []>} : vector<32x32xf32>, vector<32x128xf32>, vector<32x128xf32> -> vector<32x128xf32>
    %20 = vector.extract_strided_slice %19 {offsets = [0, 0], sizes = [32, 1], strides = [1, 1]} : vector<32x128xf32> to vector<32x1xf32>
    %21 = arith.divf %20, %18 : vector<32x1xf32>
    %cst_8 = arith.constant 1.000000e+00 : f32
    %22 = vector.broadcast %cst_8 : f32 to vector<32x1xf32>
    %23 = arith.subf %22, %21 : vector<32x1xf32>
    %24 = arith.mulf %23, %21 : vector<32x1xf32>
    %cst_9 = arith.constant 2.000000e+00 : f32
    %25 = vector.broadcast %cst_9 : f32 to vector<32x1xf32>
    %26 = arith.mulf %25, %24 : vector<32x1xf32>
    %cst_10 = arith.constant 1.000000e+00 : f32
    %27 = vector.broadcast %cst_10 : f32 to vector<32x1xf32>
    %28 = arith.addf %26, %27 : vector<32x1xf32>
    %cst_11 = arith.constant 1.000000e+00 : f32
    %29 = vector.broadcast %cst_11 : f32 to vector<32x1xf32>
    %30 = arith.addf %24, %29 : vector<32x1xf32>
    %cst_12 = arith.constant 1.000000e+00 : f32
    %31 = vector.broadcast %cst_12 : f32 to vector<32x1xf32>
    %32 = arith.addf %30, %31 : vector<32x1xf32>
    %33 = arith.divf %28, %32 : vector<32x1xf32>
    %cst_13 = arith.constant 1.000000e+00 : f32
    %34 = vector.broadcast %cst_13 : f32 to vector<32x1xf32>
    %35 = arith.subf %34, %33 : vector<32x1xf32>
    %c32_i32 = arith.constant 32 : i32
    %36 = arith.muli %arg0, %c32_i32 : i32
    %37 = tpu.iota {dimensions = array<i32: 0>} : vector<32x1xi32>
    %38 = vector.broadcast %36 : i32 to vector<32x1xi32>
    %39 = arith.addi %38, %37 : vector<32x1xi32>
    %c10_i32 = arith.constant 10 : i32
    %40 = vector.broadcast %c10_i32 : i32 to vector<32x1xi32>
    %41 = arith.cmpi slt, %39, %40 : vector<32x1xi32>
    %cst_14 = arith.constant 0.000000e+00 : f32
    %42 = vector.broadcast %cst_14 : f32 to vector<32x1xf32>
    %43 = arith.select %41, %35, %42 : vector<32x1xi1>, vector<32x1xf32>
    %c0_15 = arith.constant 0 : index
    %c0_16 = arith.constant 0 : index
    %44 = vector.load %arg3[%c0_15, %c0_16] : memref<8x128xf32, #tpu.memory_space<vmem>>, vector<8x128xf32>
    %45 = vector.shape_cast %43 : vector<32x1xf32> to vector<1x32x1xf32>
    %cst_17 = arith.constant dense<0.000000e+00> : vector<1xf32>
    %46 = vector.multi_reduction <add>, %45, %cst_17 [1, 2] : vector<1x32x1xf32> to vector<1xf32>
    %47 = vector.shape_cast %46 : vector<1xf32> to vector<1x1x1xf32>
    %48 = vector.extract %47[0, 0, 0] : f32 from vector<1x1x1xf32>
    %49 = vector.broadcast %48 : f32 to vector<8x128xf32>
    %50 = arith.addf %44, %49 : vector<8x128xf32>
    %c0_18 = arith.constant 0 : index
    %c0_19 = arith.constant 0 : index
    %51 = vector.load %arg3[%c0_18, %c0_19] : memref<8x128xf32, #tpu.memory_space<vmem>>, vector<8x128xf32>
    tpu.vector_store %arg3[%c0_18, %c0_19], %50 {strides = array<i32>} : memref<8x128xf32, #tpu.memory_space<vmem>>, vector<8x128xf32>,
    return
  }
  func.func @transform_0(%arg0: i32) -> (i32, i32) {
    %c0_i32 = arith.constant 0 : i32
    %c0_i32_0 = arith.constant 0 : i32
    return %arg0, %c0_i32 : i32, i32
  }
  func.func @transform_1(%arg0: i32) -> (i32, i32) {
    %c0_i32 = arith.constant 0 : i32
    %c0_i32_0 = arith.constant 0 : i32
    return %arg0, %c0_i32 : i32, i32
  }
  func.func @transform_2(%arg0: i32) -> (i32, i32) {
    %c0_i32 = arith.constant 0 : i32
    %c0_i32_0 = arith.constant 0 : i32
    %c0_i32_1 = arith.constant 0 : i32
    return %c0_i32, %c0_i32_0 : i32, i32
  }
}

</mosaic_0001>

<llo_original>
// kernel: tpu_custom_call.1
$region0: #{tpu_custom_call.1}
  #allocation0 [shape = 'u32[]', space=smem, size = 0x4, offset = 0x4, fixed_abs, tag = 'smem constant byte address 0x4 - core index']
  #allocation1 [shape = 'u32[144,128]{1,0:T(1,128)}', space=vmem, size = 0x12000, scoped, tag = 'internal scratch']
  %s0 = inlined_call_operand.vmem [shape: f32[10,32], index: 0, kind: input, shape index: {}]
  %s1 = inlined_call_operand.vmem [shape: s32[10,1], index: 1, kind: input, shape index: {}]
  %s2 = inlined_call_operand.hbm [shape: f32[8,128], index: 2, kind: output, shape index: {}]
  %s3 = sld [smem:[#allocation0]]
  $region22: #{tpu_custom_call.1} parent=0
    _
  %s5 = ssub.s32 1, %s3
  %s6 = scalar_select 0, %s5, %s3
  $region1: #{tpu_custom_call.1} parent=0
    #allocation2 [shape = 'u8[4096]{0}', space=vmem, size = 0x1000, scoped, tag = 'output window, operand 0, single buffered']
    #allocation3 [shape = 's32[1]{0}', space=sflag, size = 0x4, scoped, tag = 'scoped memory for tpu_custom_call.1']
    %7 = vsyncpa [#allocation3], 0
    // Predicated region
    $region2: #{tpu_custom_call.1} parent=1 // pred_check
      _
    $region3: #{tpu_custom_call.1} parent=1 // pred_check_branch
      %9 = sbr.rel (0) target = $region5
    $region4: #{tpu_custom_call.1} parent=1 // pred_region
      _
    $region5: #{tpu_custom_call.1} parent=1 // pred_fallthru
      _
    // Predicated region
    $region6: #{tpu_custom_call.1} parent=1 // pred_check
      _
    $region7: #{tpu_custom_call.1} parent=1 // pred_check_branch
      %11 = sbr.rel (0) target = $region9
    $region8: #{tpu_custom_call.1} parent=1 // pred_region
      _
    $region9: #{tpu_custom_call.1} parent=1 // pred_fallthru
      _
    %p12 = scmp.eq.s32.totalorder 0, 0
    // Predicated region
    $region10: #{tpu_custom_call.1} parent=1 // pred_check
      %p13 = pneg %p12
    $region11: #{tpu_custom_call.1} parent=1 // pred_check_branch
      %15 = sbr.rel (%p13) target = $region13
    $region12: #{tpu_custom_call.1} parent=1 // pred_region
      %16 = vst [vmem:[#allocation2] sm:$0xff] 0.0
    $region13: #{tpu_custom_call.1} parent=1 // pred_fallthru
      _
    %v17 = vld [vmem:[%s0] sm:$0xff]
    %v18 = vld [vmem:[%s0 + $0x8] sm:$0xff]
    %v19 = vld [vmem:[%s0 + $0x10] sm:$0xff]
    %v20 = vld [vmem:[%s0 + $0x18] sm:$0xff]
    %v21 = vld [vmem:[%s1] sm:$0xff]
    %v22 = vld [vmem:[%s1 + $0x8] sm:$0xff]
    %v23 = vld [vmem:[%s1 + $0x10] sm:$0xff]
    %v24 = vld [vmem:[%s1 + $0x18] sm:$0xff]
    %vm25 = vcmask 261120
    %v26 = vsel %vm25, %v17, -inf
    %27 = vmax.xlane.f32.xlu0 %v26
    %v28 = vpop.xlane.xlu0 %27
    %v29 = vsel %vm25, %v18, -inf
    %30 = vmax.xlane.f32.xlu0 %v29
    %v31 = vpop.xlane.xlu0 %30
    %v32 = vsel %vm25, %v19, -inf
    %33 = vmax.xlane.f32.xlu0 %v32
    %v34 = vpop.xlane.xlu0 %33
    %v35 = vsel %vm25, %v20, -inf
    %36 = vmax.xlane.f32.xlu0 %v35
    %v37 = vpop.xlane.xlu0 %36
    %v38 = vsub.f32 %v17, %v28
    %v39 = vsub.f32 %v18, %v31
    %v40 = vsub.f32 %v19, %v34
    %v41 = vsub.f32 %v20, %v37
    %v42 = vmul.f32 %v38, 1.442695
    %v43 = vpow.pop %v42
    %v44 = vmul.f32 %v39, 1.442695
    %v45 = vpow.pop %v44
    %v46 = vmul.f32 %v40, 1.442695
    %v47 = vpow.pop %v46
    %v48 = vmul.f32 %v41, 1.442695
    %v49 = vpow.pop %v48
    %v50 = vlaneseq
    %v51 = vand.u32 %v50, 127
    %52 = vset.pattern.permute.xlu0 0
    %53 = vperm.xlu0 %52, %v21
    %v54 = vpop.permute.xlu0 %53
    %55 = vset.pattern.permute.xlu0 0
    %56 = vperm.xlu0 %55, %v22
    %v57 = vpop.permute.xlu0 %56
    %58 = vset.pattern.permute.xlu0 0
    %59 = vperm.xlu0 %58, %v23
    %v60 = vpop.permute.xlu0 %59
    %61 = vset.pattern.permute.xlu0 0
    %62 = vperm.xlu0 %61, %v24
    %v63 = vpop.permute.xlu0 %62
    %vm64 = vcmp.eq.s32.totalorder %v51, %v54
    %vm65 = vcmp.eq.s32.totalorder %v51, %v57
    %vm66 = vcmp.eq.s32.totalorder %v51, %v60
    %vm67 = vcmp.eq.s32.totalorder %v51, %v63
    %v68 = vsel %vm64, %v43, 0.0
    %v69 = vsel %vm65, %v45, 0.0
    %v70 = vsel %vm66, %v47, 0.0
    %v71 = vsel %vm67, %v49, 0.0
    %v73 = vsel %vm25, %v43, 0
    %v76 = vsel %vm25, %v45, 0
    %v79 = vsel %vm25, %v47, 0
    %v82 = vsel %vm25, %v49, 0
    %84 = vmatprep.subr.mxu0 0.0
    %85 = vmatpush1.msra.mxu0 0.0
    %86 = vmatprep.subr.mxu0 0.0
    %87 = vmatpush1.msra.mxu0 0.0
    %88 = vmatprep.subr.mxu0 0.0
    %89 = vmatpush1.msra.mxu0 0.0
    %90 = vmatprep.subr.mxu0 0.0
    %91 = vmatpush1.msra.mxu0 0.0
    %92 = vmatprep.subr.mxu0 0.0
    %93 = vmatpush1.msra.mxu0 0.0
    %94 = vmatprep.subr.mxu0 0.0
    %95 = vmatpush1.msra.mxu0 0.0
    %96 = vmatprep.subr.mxu0 0.0
    %97 = vmatpush1.msra.mxu0 0.0
    %98 = vmatprep.subr.mxu0 0.0
    %99 = vmatpush1.msra.mxu0 0.0
    %100 = vmatprep.subr.mxu0 0.0
    %101 = vmatpush1.msra.mxu0 0.0
    %102 = vmatprep.subr.mxu0 0.0
    %103 = vmatpush1.msra.mxu0 0.0
    %104 = vmatprep.subr.mxu0 0.0
    %105 = vmatpush1.msra.mxu0 0.0
    %106 = vmatprep.subr.mxu0 0.0
    %107 = vmatpush1.msra.mxu0 0.0
    %108 = vmatprep.subr.mxu0 0.0
    %109 = vmatpush1.msra.mxu0 1.0
    %110 = vmatprep.subr.mxu0 0.0
    %111 = vmatpush1.msra.mxu0 1.0
    %112 = vmatprep.subr.mxu0 0.0
    %113 = vmatpush1.msra.mxu0 1.0
    %114 = vmatprep.subr.mxu0 0.0
    %115 = vmatpush1.msra.mxu0 1.0
    %116 = vmatprep.subr.mxu0 0.0
    %117 = vmatpush2.msra.mxu0 0.0
    %118 = vmatprep.subr.mxu0 0.0
    %119 = vmatpush2.msra.mxu0 0.0
    %120 = vmatprep.subr.mxu0 0.0
    %121 = vmatpush2.msra.mxu0 0.0
    %122 = vmatprep.subr.mxu0 0.0
    %123 = vmatpush2.msra.mxu0 0.0
    %124 = vmatprep.subr.mxu0 0.0
    %125 = vmatpush2.msra.mxu0 0.0
    %126 = vmatprep.subr.mxu0 0.0
    %127 = vmatpush2.msra.mxu0 0.0
    %128 = vmatprep.subr.mxu0 0.0
    %129 = vmatpush2.msra.mxu0 0.0
    %130 = vmatprep.subr.mxu0 0.0
    %131 = vmatpush2.msra.mxu0 0.0
    %132 = vmatprep.subr.mxu0 0.0
    %133 = vmatpush2.msra.mxu0 0.0
    %134 = vmatprep.subr.mxu0 0.0
    %135 = vmatpush2.msra.mxu0 0.0
    %136 = vmatprep.subr.mxu0 0.0
    %137 = vmatpush2.msra.mxu0 0.0
    %138 = vmatprep.subr.mxu0 0.0
    %139 = vmatpush2.msra.mxu0 0.0
    %140 = vmatprep.subr.mxu0 0.0
    %141 = vmatpush2.msra.mxu0 0.0
    %142 = vmatprep.subr.mxu0 0.0
    %143 = vmatpush2.msra.mxu0 0.0
    %144 = vmatprep.subr.mxu0 0.0
    %145 = vmatpush2.msra.mxu0 0.0
    %146 = vmatprep.subr.mxu0 0.0
    %147 = vmatpush2.msra.mxu0 0.0
    %148 = vmatprep.mubr.f32.mxu0 0.0
    %149 = vmatmul.mubr.f32.gmra.mxu0 %v73
    %v150 = vpop.f32.mrf.mxu0
    %v151 = vadd.f32 0.0, %v150
    %v152 = vpop.f32.mrf.mxu0
    %153 = vmatprep.mubr.f32.mxu0 0.0
    %154 = vmatmul.mubr.f32.gmra.mxu0 %v76
    %v155 = vpop.f32.mrf.mxu0
    %v156 = vadd.f32 0.0, %v155
    %v157 = vpop.f32.mrf.mxu0
    %158 = vmatprep.mubr.f32.mxu0 0.0
    %159 = vmatmul.mubr.f32.gmra.mxu0 %v79
    %v160 = vpop.f32.mrf.mxu0
    %v161 = vadd.f32 0.0, %v160
    %v162 = vpop.f32.mrf.mxu0
    %163 = vmatprep.mubr.f32.mxu0 0.0
    %164 = vmatmul.mubr.f32.gmra.mxu0 %v82
    %v165 = vpop.f32.mrf.mxu0
    %v166 = vadd.f32 0.0, %v165
    %v167 = vpop.f32.mrf.mxu0
    %168 = vdwg.mxu0
    %v170 = vsel %vm25, %v68, 0
    %v173 = vsel %vm25, %v69, 0
    %v176 = vsel %vm25, %v70, 0
    %v179 = vsel %vm25, %v71, 0
    %181 = vmatprep.subr.mxu0 0.0
    %182 = vmatpush1.msra.mxu0 0.0
    %183 = vmatprep.subr.mxu0 0.0
    %184 = vmatpush1.msra.mxu0 0.0
    %185 = vmatprep.subr.mxu0 0.0
    %186 = vmatpush1.msra.mxu0 0.0
    %187 = vmatprep.subr.mxu0 0.0
    %188 = vmatpush1.msra.mxu0 0.0
    %189 = vmatprep.subr.mxu0 0.0
    %190 = vmatpush1.msra.mxu0 0.0
    %191 = vmatprep.subr.mxu0 0.0
    %192 = vmatpush1.msra.mxu0 0.0
    %193 = vmatprep.subr.mxu0 0.0
    %194 = vmatpush1.msra.mxu0 0.0
    %195 = vmatprep.subr.mxu0 0.0
    %196 = vmatpush1.msra.mxu0 0.0
    %197 = vmatprep.subr.mxu0 0.0
    %198 = vmatpush1.msra.mxu0 0.0
    %199 = vmatprep.subr.mxu0 0.0
    %200 = vmatpush1.msra.mxu0 0.0
    %201 = vmatprep.subr.mxu0 0.0
    %202 = vmatpush1.msra.mxu0 0.0
    %203 = vmatprep.subr.mxu0 0.0
    %204 = vmatpush1.msra.mxu0 0.0
    %205 = vmatprep.subr.mxu0 0.0
    %206 = vmatpush1.msra.mxu0 1.0
    %207 = vmatprep.subr.mxu0 0.0
    %208 = vmatpush1.msra.mxu0 1.0
    %209 = vmatprep.subr.mxu0 0.0
    %210 = vmatpush1.msra.mxu0 1.0
    %211 = vmatprep.subr.mxu0 0.0
    %212 = vmatpush1.msra.mxu0 1.0
    %213 = vmatprep.subr.mxu0 0.0
    %214 = vmatpush2.msra.mxu0 0.0
    %215 = vmatprep.subr.mxu0 0.0
    %216 = vmatpush2.msra.mxu0 0.0
    %217 = vmatprep.subr.mxu0 0.0
    %218 = vmatpush2.msra.mxu0 0.0
    %219 = vmatprep.subr.mxu0 0.0
    %220 = vmatpush2.msra.mxu0 0.0
    %221 = vmatprep.subr.mxu0 0.0
    %222 = vmatpush2.msra.mxu0 0.0
    %223 = vmatprep.subr.mxu0 0.0
    %224 = vmatpush2.msra.mxu0 0.0
    %225 = vmatprep.subr.mxu0 0.0
    %226 = vmatpush2.msra.mxu0 0.0
    %227 = vmatprep.subr.mxu0 0.0
    %228 = vmatpush2.msra.mxu0 0.0
    %229 = vmatprep.subr.mxu0 0.0
    %230 = vmatpush2.msra.mxu0 0.0
    %231 = vmatprep.subr.mxu0 0.0
    %232 = vmatpush2.msra.mxu0 0.0
    %233 = vmatprep.subr.mxu0 0.0
    %234 = vmatpush2.msra.mxu0 0.0
    %235 = vmatprep.subr.mxu0 0.0
    %236 = vmatpush2.msra.mxu0 0.0
    %237 = vmatprep.subr.mxu0 0.0
    %238 = vmatpush2.msra.mxu0 0.0
    %239 = vmatprep.subr.mxu0 0.0
    %240 = vmatpush2.msra.mxu0 0.0
    %241 = vmatprep.subr.mxu0 0.0
    %242 = vmatpush2.msra.mxu0 0.0
    %243 = vmatprep.subr.mxu0 0.0
    %244 = vmatpush2.msra.mxu0 0.0
    %245 = vmatprep.mubr.f32.mxu0 0.0
    %246 = vmatmul.mubr.f32.gmra.mxu0 %v170
    %v247 = vpop.f32.mrf.mxu0
    %v248 = vadd.f32 0.0, %v247
    %v249 = vpop.f32.mrf.mxu0
    %250 = vmatprep.mubr.f32.mxu0 0.0
    %251 = vmatmul.mubr.f32.gmra.mxu0 %v173
    %v252 = vpop.f32.mrf.mxu0
    %v253 = vadd.f32 0.0, %v252
    %v254 = vpop.f32.mrf.mxu0
    %255 = vmatprep.mubr.f32.mxu0 0.0
    %256 = vmatmul.mubr.f32.gmra.mxu0 %v176
    %v257 = vpop.f32.mrf.mxu0
    %v258 = vadd.f32 0.0, %v257
    %v259 = vpop.f32.mrf.mxu0
    %260 = vmatprep.mubr.f32.mxu0 0.0
    %261 = vmatmul.mubr.f32.gmra.mxu0 %v179
    %v262 = vpop.f32.mrf.mxu0
    %v263 = vadd.f32 0.0, %v262
    %v264 = vpop.f32.mrf.mxu0
    %265 = vdwg.mxu0
    %v266 = vrcp.pop %v151
    %v267 = vmul.f32 %v248, %v266
    %v268 = vrcp.pop %v156
    %v269 = vmul.f32 %v253, %v268
    %v270 = vrcp.pop %v161
    %v271 = vmul.f32 %v258, %v270
    %v272 = vrcp.pop %v166
    %v273 = vmul.f32 %v263, %v272
    %v274 = vsub.f32 1.0, %v267
    %v275 = vsub.f32 1.0, %v269
    %v276 = vsub.f32 1.0, %v271
    %v277 = vsub.f32 1.0, %v273
    %v278 = vmul.f32 %v274, %v267
    %v279 = vmul.f32 %v275, %v269
    %v280 = vmul.f32 %v276, %v271
    %v281 = vmul.f32 %v277, %v273
    %v282 = vmul.f32 %v278, 2.0
    %v283 = vmul.f32 %v279, 2.0
    %v284 = vmul.f32 %v280, 2.0
    %v285 = vmul.f32 %v281, 2.0
    %v286 = vadd.f32 %v282, 1.0
    %v287 = vadd.f32 %v283, 1.0
    %v288 = vadd.f32 %v284, 1.0
    %v289 = vadd.f32 %v285, 1.0
    %v290 = vadd.f32 %v278, 1.0
    %v291 = vadd.f32 %v279, 1.0
    %v292 = vadd.f32 %v280, 1.0
    %v293 = vadd.f32 %v281, 1.0
    %v294 = vadd.f32 %v290, 1.0
    %v295 = vadd.f32 %v291, 1.0
    %v296 = vadd.f32 %v292, 1.0
    %v297 = vadd.f32 %v293, 1.0
    %v298 = vrcp.pop %v294
    %v299 = vmul.f32 %v286, %v298
    %v300 = vrcp.pop %v295
    %v301 = vmul.f32 %v287, %v300
    %v302 = vrcp.pop %v296
    %v303 = vmul.f32 %v288, %v302
    %v304 = vrcp.pop %v297
    %v305 = vmul.f32 %v289, %v304
    %v306 = vsub.f32 1.0, %v299
    %v307 = vsub.f32 1.0, %v301
    %v308 = vsub.f32 1.0, %v303
    %v309 = vsub.f32 1.0, %v305
    %s310 = smul.u32 0, 32
    %v311 = vlaneseq
    %v312 = vshrl.u32 %v311, 7
    %v313 = vadd.s32 %v312, 8
    %v314 = vadd.s32 %v312, 16
    %v315 = vadd.s32 %v312, 24
    %v316 = vstv %s310
    %v317 = vadd.s32 %v316, %v312
    %v318 = vadd.s32 %v316, %v313
    %v319 = vadd.s32 %v316, %v314
    %v320 = vadd.s32 %v316, %v315
    %vm321 = vcmp.lt.s32.totalorder %v317, 10
    %vm322 = vcmp.lt.s32.totalorder %v318, 10
    %vm323 = vcmp.lt.s32.totalorder %v319, 10
    %vm324 = vcmp.lt.s32.totalorder %v320, 10
    %v325 = vsel %vm321, %v306, 0.0
    %v326 = vsel %vm322, %v307, 0.0
    %v327 = vsel %vm323, %v308, 0.0
    %v328 = vsel %vm324, %v309, 0.0
    %v329 = vld [vmem:[#allocation2] sm:$0xff]
    %vm330 = vcmask 7168
    %v331 = vsel %vm330, %v325, 0.0
    %v332 = vsel %vm330, %v326, 0.0
    %v333 = vadd.f32 %v331, %v332
    %v334 = vsel %vm330, %v327, 0.0
    %v335 = vadd.f32 %v333, %v334
    %v336 = vsel %vm330, %v328, 0.0
    %v337 = vadd.f32 %v335, %v336
    %338 = vadd.xlane.f32.xlu0 %v337
    %v339 = vpop.xlane.xlu0 %338
    %v340 = vrot.slane %v339, 4
    %v341 = vadd.f32 %v339, %v340
    %v342 = vrot.slane %v341, 2
    %v343 = vadd.f32 %v341, %v342
    %v344 = vrot.slane %v343, 1
    %v345 = vadd.f32 %v343, %v344
    %s346 = vtos %v345
    %v347 = vstv %s346
    %v348 = vadd.f32 %v329, %v347
    %349 = vst [vmem:[#allocation2] sm:$0xff] %v348
    // Predicated region
    $region14: #{tpu_custom_call.1} parent=1 // pred_check
      _
    $region15: #{tpu_custom_call.1} parent=1 // pred_check_branch
      %351 = sbr.rel (0) target = $region17
    $region16: #{tpu_custom_call.1} parent=1 // pred_region
      %s353 = ssub.s32 128, 128
      %354 = vsyncadd [#allocation3], %s353
      %s356 = sshll.u32 [#allocation2], 4
      %s357 = int_to_ptr.vmem [resolvable:$true] %s356
      %359 = dma.vmem_to_hbm [thread:$0]  %s357, 128, %s2, [#allocation3]
    $region17: #{tpu_custom_call.1} parent=1 // pred_fallthru
      _
    // Predicated region
    $region18: #{tpu_custom_call.1} parent=1 // pred_check
      _
    $region19: #{tpu_custom_call.1} parent=1 // pred_check_branch
      %361 = sbr.rel (0) target = $region21
    $region20: #{tpu_custom_call.1} parent=1 // pred_region
      %362 = dma.done [#allocation3], 128
    $region21: #{tpu_custom_call.1} parent=1 // pred_fallthru
      _
    %363 = vsyncpa [#allocation3], 1

</llo_original>
